<compile_context>
chip_gen: v5e
topology: v5e:2x2
jax: 0.10.0
libtpu: 0.0.40
codegen_flags: <defaults>
</compile_context>

<pallas_src>
import math

import jax
import jax.numpy as jnp
from jax.experimental import pallas as pl
from jax.experimental.pallas import tpu as pltpu


def _copy_kernel(x_ref, o_ref):
    # Identity copy of the current (tile_rows, lanes) tile.
    o_ref[...] = x_ref[...]


def _resolve_size(size, total):
    """Resolve a single -1 dimension, mirroring torch.Tensor.view semantics."""
    size = list(size)
    neg = [i for i, s in enumerate(size) if s == -1]
    if len(neg) > 1:
        raise ValueError("only one dimension can be -1")
    if neg:
        known = 1
        for i, s in enumerate(size):
            if i != neg[0]:
                known *= s
        if known == 0 or total % known != 0:
            raise ValueError(f"cannot reshape {total} elements into {size}")
        size[neg[0]] = total // known
    if math.prod(size) != total:
        raise ValueError(f"cannot reshape {total} elements into {size}")
    return tuple(size)


_TARGET_TILE_BYTES = 4 * 1024 * 1024    # ~4 MiB per tile (double-buffered in+out ~16 MiB)
_VMEM_LIMIT_BYTES = 32 * 1024 * 1024    # fits v7x (64 MiB physical), raises v5e's 16 MiB default
_LANE_CANDIDATES = (4096, 2048, 1024, 512, 256, 128)


def _sublane_min(itemsize):
    # Packed-sublane minimum: 8 rows for 32-bit, 16 for 16-bit, 32 for 8-bit dtypes.
    return max(8, 32 // max(1, itemsize))


def _choose_lanes(total, sub_min):
    """Largest lane width that divides `total`, preferring rows >= sublane min."""
    best_div = None
    for lanes in _LANE_CANDIDATES:
        if total % lanes == 0:
            if best_div is None:
                best_div = lanes
            if total // lanes >= sub_min:
                return lanes
    return best_div  # None if total is not a multiple of 128 (padding fallback)


def _choose_tile_rows(rows, lanes, itemsize, sub_min):
    row_bytes = lanes * itemsize
    tile_rows = max(1, _TARGET_TILE_BYTES // row_bytes)
    if tile_rows >= sub_min:
        tile_rows = (tile_rows // sub_min) * sub_min
    tile_rows = min(tile_rows, rows)
    # Prefer >= 2 grid steps so v7x can shard the axis across its 2 TensorCores
    # (neutral on the single-TC v5e/v6e).
    if tile_rows == rows and rows >= 2 * sub_min:
        tile_rows = max(sub_min, ((rows // 2) // sub_min) * sub_min)
    return tile_rows


def _pallas_copy_slab(slab, tile_rows):
    rows, lanes = slab.shape
    grid_rows = pl.cdiv(rows, tile_rows)
    nbytes = slab.size * slab.dtype.itemsize
    return pl.pallas_call(
        _copy_kernel,
        out_shape=jax.ShapeDtypeStruct((rows, lanes), slab.dtype),
        grid_spec=pltpu.PrefetchScalarGridSpec(
            num_scalar_prefetch=0,
            grid=(grid_rows,),
            in_specs=[pl.BlockSpec((tile_rows, lanes), lambda i: (i, 0))],
            out_specs=pl.BlockSpec((tile_rows, lanes), lambda i: (i, 0)),
        ),
        compiler_params=pltpu.CompilerParams(
            dimension_semantics=("parallel",),
            vmem_limit_bytes=_VMEM_LIMIT_BYTES,
        ),
        cost_estimate=pl.CostEstimate(
            flops=0, transcendentals=0, bytes_accessed=2 * nbytes
        ),
    )(slab)


def pallas_reshape(x, size):
    """Equivalent of `x.view(*size)` with the data movement done in Pallas."""
    total = x.size
    out_shape = _resolve_size(size, total)
    if total == 0:
        return jnp.reshape(x, out_shape)

    itemsize = x.dtype.itemsize
    sub_min = _sublane_min(itemsize)
    flat = x.reshape(-1)

    lanes = _choose_lanes(total, sub_min)
    if lanes is not None:
        # Fast path: flat length factors exactly into a lane-dense slab.
        # One HBM read + one HBM write; no pad / no post-slice.
        rows = total // lanes
        slab = flat.reshape(rows, lanes)
        tile_rows = _choose_tile_rows(rows, lanes, itemsize, sub_min)
        copied = _pallas_copy_slab(slab, tile_rows)
        return copied.reshape(out_shape)

    # Fallback (flat length not a multiple of 128): pad to a lane-dense slab,
    # copy, strip the pad.  Only this rare path pays the extra passes.
    lanes = 1024
    padded = pl.cdiv(total, lanes) * lanes
    flat = jnp.pad(flat, (0, padded - total))
    rows = padded // lanes
    slab = flat.reshape(rows, lanes)
    tile_rows = _choose_tile_rows(rows, lanes, itemsize, sub_min)
    copied = _pallas_copy_slab(slab, tile_rows)
    return copied.reshape(-1)[:total].reshape(out_shape)


class Reshape:
    """JAX/Pallas counterpart of the PyTorch Reshape module."""

    def __init__(self, size):
        self.size = size

    def __call__(self, x):
        return pallas_reshape(x, self.size)


if __name__ == "__main__":
    key = jax.random.PRNGKey(0)

    # Small NCHW-style input: batch=2, channels=4, spatial=16x16.
    x = jax.random.normal(key, (2, 4, 16, 16), dtype=jnp.float32)

    # Mirrors input.view(2, 4, -1).
    mod = Reshape((2, 4, -1))
    out = jax.block_until_ready(mod(x))

    assert out.shape == (2, 4, 256), out.shape
    assert out.dtype == x.dtype
    # view semantics: same data, row-major re-interpretation.
    assert bool(jnp.allclose(out.reshape(-1), x.reshape(-1)))

    # Exercise the ragged (non-multiple-of-128) fallback path too.
    y = jax.random.normal(jax.random.PRNGKey(1), (3, 5, 7), dtype=jnp.float32)
    out2 = jax.block_until_ready(Reshape((5, -1))(y))
    assert out2.shape == (5, 21), out2.shape
    assert bool(jnp.allclose(out2.reshape(-1), y.reshape(-1)))

    print("KERNEL_OK")
</pallas_src>

<mosaic_0001>
module attributes {stable_mosaic.version = 11 : i64} {
  func.func @_copy_kernel(%arg0: i32, %arg1: memref<8x256xf32, #tpu.memory_space<vmem>>, %arg2: memref<8x256xf32, #tpu.memory_space<vmem>>) attributes {dimension_semantics = [#tpu.dimension_semantics<parallel>], iteration_bounds = array<i64: 1>, scalar_prefetch = 0 : i64, scratch_operands = 0 : i64, tpu.core_type = #tpu.core_type<tc>, window_params = [{transform_indices = @transform_0, window_bounds = array<i64: 8, 256>}, {transform_indices = @transform_1, window_bounds = array<i64: 8, 256>}]} {
    %c0 = arith.constant 0 : index
    %c0_0 = arith.constant 0 : index
    %0 = vector.load %arg1[%c0, %c0_0] : memref<8x256xf32, #tpu.memory_space<vmem>>, vector<8x256xf32>
    %c0_1 = arith.constant 0 : index
    %c0_2 = arith.constant 0 : index
    %1 = vector.load %arg2[%c0_1, %c0_2] : memref<8x256xf32, #tpu.memory_space<vmem>>, vector<8x256xf32>
    tpu.vector_store %arg2[%c0_1, %c0_2], %0 {strides = array<i32>} : memref<8x256xf32, #tpu.memory_space<vmem>>, vector<8x256xf32>,
    return
  }
  func.func @transform_0(%arg0: i32) -> (i32, i32) {
    %c0_i32 = arith.constant 0 : i32
    %c0_i32_0 = arith.constant 0 : i32
    return %arg0, %c0_i32 : i32, i32
  }
  func.func @transform_1(%arg0: i32) -> (i32, i32) {
    %c0_i32 = arith.constant 0 : i32
    %c0_i32_0 = arith.constant 0 : i32
    return %arg0, %c0_i32 : i32, i32
  }
}

</mosaic_0001>

<llo_original>
// kernel: tpu_custom_call.1
$region0: #{tpu_custom_call.1}
  #allocation0 [shape = 'u32[]', space=smem, size = 0x4, offset = 0x4, fixed_abs, tag = 'smem constant byte address 0x4 - core index']
  #allocation1 [shape = 'u32[72,128]{1,0:T(1,128)}', space=vmem, size = 0x9000, scoped, tag = 'internal scratch']
  %s0 = inlined_call_operand.hbm [shape: f32[8,256], index: 0, kind: input, shape index: {}]
  %s1 = inlined_call_operand.hbm [shape: f32[8,256], index: 1, kind: output, shape index: {}]
  %s2 = sld [smem:[#allocation0]]
  $region18: #{tpu_custom_call.1} parent=0
    _
  %s4 = ssub.s32 1, %s2
  %s5 = scalar_select 0, %s4, %s2
  $region1: #{tpu_custom_call.1} parent=0
    #allocation2 [shape = 'u8[8192]{0}', space=vmem, size = 0x2000, scoped, tag = 'input window, operand 0, single buffered']
    #allocation3 [shape = 's32[1]{0}', space=sflag, size = 0x4, scoped, tag = 'scoped memory for tpu_custom_call.1']
    #allocation4 [shape = 's32[1]{0}', space=sflag, size = 0x4, scoped, tag = 'scoped memory for tpu_custom_call.1']
    #allocation5 [shape = 'u8[8192]{0}', space=vmem, size = 0x2000, scoped, tag = 'output window, operand 0, single buffered']
    %6 = vsyncpa [#allocation3], 0
    %7 = vsyncpa [#allocation4], 0
    // Predicated region
    $region2: #{tpu_custom_call.1} parent=1 // pred_check
      _
    $region3: #{tpu_custom_call.1} parent=1 // pred_check_branch
      %9 = sbr.rel (0) target = $region5
    $region4: #{tpu_custom_call.1} parent=1 // pred_region
      %11 = vsyncadd [#allocation3], 0
      %s13 = sshll.u32 %s0, 4
      %s14 = int_to_ptr.hbm [resolvable:$true] %s13
      %s15 = sshll.u32 [#allocation2], 4
      %s16 = int_to_ptr.vmem [resolvable:$true] %s15
      %18 = dma.hbm_to_vmem [thread:$0]  %s14, 256, %s16, [#allocation3]
    $region5: #{tpu_custom_call.1} parent=1 // pred_fallthru
      _
    // Predicated region
    $region6: #{tpu_custom_call.1} parent=1 // pred_check
      _
    $region7: #{tpu_custom_call.1} parent=1 // pred_check_branch
      %20 = sbr.rel (0) target = $region9
    $region8: #{tpu_custom_call.1} parent=1 // pred_region
      %22 = dma.done [#allocation3], 256
    $region9: #{tpu_custom_call.1} parent=1 // pred_fallthru
      _
    %v23 = vld [vmem:[#allocation2] sm:$0xff]
    %v24 = vld [vmem:[#allocation2 + $0x8] sm:$0xff]
    %25 = vst [vmem:[#allocation5] sm:$0xff] %v23
    %26 = vst [vmem:[#allocation5 + $0x8] sm:$0xff] %v24
    // Predicated region
    $region10: #{tpu_custom_call.1} parent=1 // pred_check
      _
    $region11: #{tpu_custom_call.1} parent=1 // pred_check_branch
      %28 = sbr.rel (0) target = $region13
    $region12: #{tpu_custom_call.1} parent=1 // pred_region
      %30 = vsyncadd [#allocation4], 0
      %s32 = sshll.u32 [#allocation5], 4
      %s33 = int_to_ptr.vmem [resolvable:$true] %s32
      %s34 = sshll.u32 %s1, 4
      %s35 = int_to_ptr.hbm [resolvable:$true] %s34
      %37 = dma.vmem_to_hbm [thread:$0]  %s33, 256, %s35, [#allocation4]
    $region13: #{tpu_custom_call.1} parent=1 // pred_fallthru
      _
    // Predicated region
    $region14: #{tpu_custom_call.1} parent=1 // pred_check
      _
    $region15: #{tpu_custom_call.1} parent=1 // pred_check_branch
      %39 = sbr.rel (0) target = $region17
    $region16: #{tpu_custom_call.1} parent=1 // pred_region
      %41 = dma.done [#allocation4], 256
    $region17: #{tpu_custom_call.1} parent=1 // pred_fallthru
      _
    %42 = vsyncpa [#allocation3], 1
    %43 = vsyncpa [#allocation4], 1

</llo_original>
